<compile_context>
chip_gen: v5e
topology: v5e:2x2
jax: 0.10.0
libtpu: 0.0.40
codegen_flags: <defaults>
</compile_context>

<pallas_src>
import functools

import jax
import jax.numpy as jnp
from jax.experimental import pallas as pl
from jax.experimental.pallas import tpu as pltpu


def _h_swish_kernel(x_ref, o_ref):
    x = x_ref[...]
    # hard-swish: x * relu6(x + 3) / 6 == x * clip(x + 3, 0, 6) * (1/6)
    hs = jnp.clip(x + 3.0, 0.0, 6.0) * (1.0 / 6.0)
    o_ref[...] = (x * hs).astype(o_ref.dtype)


_LANE = 1024  # lane-dense slab width (multiple of 128)


@functools.lru_cache(maxsize=None)
def _target_tile_bytes():
    """Generation-aware block size (bytes of input per grid step)."""
    try:
        vmem_cap = int(pltpu.get_tpu_info().vmem_capacity_bytes)
    except Exception:  # unknown chip / old jax / interpret mode -> safe default
        vmem_cap = 0
    if 0 < vmem_cap <= (64 << 20):
        # v7x-class: less VMEM but 3.2 TB/s HBM makes per-step overhead
        # proportionally larger -> bigger block. 4x10 MiB + headroom < 64 MiB.
        return 10 << 20
    # v5e/v6e (128 MiB VMEM) and unknown chips: 8 MiB blocks are plenty to
    # hide the ~0.35 us/step grid overhead behind the per-step DMA time.
    return 8 << 20


def _sublane_pack(dtype):
    """Rows per packed 32-bit sublane: 8 (f32), 16 (bf16/f16), 32 (int8/fp8)."""
    return max(8, 32 // jnp.dtype(dtype).itemsize)


def _h_swish_2d(x2d, *, donate=False):
    """Hard-swish over a 2-D slab, tiling along rows (lane dim stays whole)."""
    rows, lane = x2d.shape
    dtype = x2d.dtype
    pack = _sublane_pack(dtype)
    bytes_per_row = lane * jnp.dtype(dtype).itemsize

    # Biggest block that fits the generation-aware budget, rounded to the
    # dtype's sublane packing multiple.
    tile_rows = max(pack, (_target_tile_bytes() // bytes_per_row) // pack * pack)
    if rows <= tile_rows:
        tile_rows = rows  # block dim == full array dim is always legal
    num_blocks = pl.cdiv(rows, tile_rows)

    if num_blocks == 1 and rows >= 2 * pack:
        # Give v7x's two TensorCores something to shard: at least 2 blocks.
        tile_rows = pl.cdiv(pl.cdiv(rows, 2), pack) * pack
        num_blocks = pl.cdiv(rows, tile_rows)
    elif num_blocks > 1 and num_blocks % 2 == 1:
        # Prefer an even block count so the two cores stay balanced.
        tile_rows = max(pack, pl.cdiv(pl.cdiv(rows, num_blocks + 1), pack) * pack)
        num_blocks = pl.cdiv(rows, tile_rows)

    tile_bytes = tile_rows * bytes_per_row
    # Input + output, each double-buffered (~4x tile) plus headroom; keep it
    # above the 16/32 MiB scoped defaults and below v7x's 64 MiB physical VMEM.
    vmem_limit = min(max(4 * tile_bytes + (4 << 20), 32 << 20), 56 << 20)

    return pl.pallas_call(
        _h_swish_kernel,
        out_shape=jax.ShapeDtypeStruct((rows, lane), dtype),
        grid_spec=pltpu.PrefetchScalarGridSpec(
            num_scalar_prefetch=0,
            grid=(num_blocks,),
            in_specs=[pl.BlockSpec((tile_rows, lane), lambda i: (i, 0))],
            out_specs=pl.BlockSpec((tile_rows, lane), lambda i: (i, 0)),
        ),
        compiler_params=pltpu.CompilerParams(
            dimension_semantics=("parallel",),
            vmem_limit_bytes=vmem_limit,
        ),
        input_output_aliases={0: 0} if donate else {},
    )(x2d)


def h_swish(x, *, donate=False):
    """Elementwise hard-swish (x * relu6(x + 3) / 6) on any-shaped array."""
    orig_shape = x.shape
    n = x.size
    if n == 0:
        return x
    x_flat = jnp.ravel(x)  # contiguous reshape: free bitcast

    if n % _LANE == 0:
        # Fast path: lane-dense (rows, 1024) slab, no copies beyond the kernel.
        out2d = _h_swish_2d(x_flat.reshape(n // _LANE, _LANE), donate=donate)
        return out2d.reshape(orig_shape)

    if n < _LANE:
        # Whole array fits in one lane row: single full-array block, no padding.
        out2d = _h_swish_2d(x_flat.reshape(1, n), donate=donate)
        return out2d.reshape(orig_shape)

    # Ragged path: run the kernel on the aligned prefix and compute the
    # (< 1024 element) tail with plain jnp -- no full-array jnp.pad on the
    # input and no full-array slice on the output.
    n_main = (n // _LANE) * _LANE
    main = _h_swish_2d(
        x_flat[:n_main].reshape(n_main // _LANE, _LANE), donate=False
    ).reshape(-1)
    tail = x_flat[n_main:]
    tail = tail * (jnp.clip(tail + 3.0, 0.0, 6.0) * (1.0 / 6.0))
    return jnp.concatenate([main, tail]).reshape(orig_shape)


def h_swish_ref(x):
    return x * (jnp.clip(x + 3.0, 0.0, 6.0) * (1.0 / 6.0))


if __name__ == "__main__":
    key = jax.random.PRNGKey(0)
    k0, k1, k2, k3 = jax.random.split(key, 4)

    # Primary NCHW feature map (PyTorch conv style), f32, lane-aligned size.
    x = jax.random.normal(k0, (2, 4, 16, 16), dtype=jnp.float32) * 4.0
    y = jax.block_until_ready(h_swish(x))
    assert y.shape == x.shape and y.dtype == x.dtype
    assert jnp.max(jnp.abs(y - h_swish_ref(x))) < 1e-6

    # Ragged (non-multiple-of-1024) size: aligned-prefix kernel + jnp tail.
    x2 = jax.random.normal(k1, (3, 5, 7, 11), dtype=jnp.float32) * 4.0
    y2 = jax.block_until_ready(h_swish(x2))
    assert y2.shape == x2.shape
    assert jnp.max(jnp.abs(y2 - h_swish_ref(x2))) < 1e-6

    # Larger aligned f32 case that exercises the >= 2-block (megacore) grid.
    x3 = jax.random.normal(k2, (4, 8, 32, 32), dtype=jnp.float32) * 4.0
    y3 = jax.block_until_ready(h_swish(x3))
    assert jnp.max(jnp.abs(y3 - h_swish_ref(x3))) < 1e-6

    # bf16 path: native dtype preserved, sublane-packing-aware tiling.
    xb = (jax.random.normal(k3, (2, 8, 32, 32), dtype=jnp.float32) * 4.0).astype(
        jnp.bfloat16
    )
    yb = jax.block_until_ready(h_swish(xb))
    assert yb.dtype == jnp.bfloat16 and yb.shape == xb.shape
    assert (
        jnp.max(
            jnp.abs(yb.astype(jnp.float32) - h_swish_ref(xb).astype(jnp.float32))
        )
        < 0.05
    )

    print("KERNEL_OK")
</pallas_src>

<mosaic_0001>
module attributes {stable_mosaic.version = 11 : i64} {
  func.func @_h_swish_kernel(%arg0: i32, %arg1: memref<2x1024xf32, #tpu.memory_space<vmem>>, %arg2: memref<2x1024xf32, #tpu.memory_space<vmem>>) attributes {dimension_semantics = [#tpu.dimension_semantics<parallel>], iteration_bounds = array<i64: 1>, scalar_prefetch = 0 : i64, scratch_operands = 0 : i64, tpu.core_type = #tpu.core_type<tc>, window_params = [{transform_indices = @transform_0, window_bounds = array<i64: 2, 1024>}, {transform_indices = @transform_1, window_bounds = array<i64: 2, 1024>}]} {
    %c0 = arith.constant 0 : index
    %c0_0 = arith.constant 0 : index
    %0 = vector.load %arg1[%c0, %c0_0] : memref<2x1024xf32, #tpu.memory_space<vmem>>, vector<2x1024xf32>
    %cst = arith.constant 3.000000e+00 : f32
    %1 = vector.broadcast %cst : f32 to vector<2x1024xf32>
    %2 = arith.addf %0, %1 : vector<2x1024xf32>
    %cst_1 = arith.constant 0.000000e+00 : f32
    %cst_2 = arith.constant 6.000000e+00 : f32
    %3 = vector.broadcast %cst_1 : f32 to vector<2x1024xf32>
    %4 = arith.maximumf %3, %2 : vector<2x1024xf32>
    %5 = vector.broadcast %cst_2 : f32 to vector<2x1024xf32>
    %6 = arith.minimumf %5, %4 : vector<2x1024xf32>
    %cst_3 = arith.constant 0.166666672 : f32
    %7 = vector.broadcast %cst_3 : f32 to vector<2x1024xf32>
    %8 = arith.mulf %6, %7 : vector<2x1024xf32>
    %9 = arith.mulf %0, %8 : vector<2x1024xf32>
    %c0_4 = arith.constant 0 : index
    %c0_5 = arith.constant 0 : index
    %10 = vector.load %arg2[%c0_4, %c0_5] : memref<2x1024xf32, #tpu.memory_space<vmem>>, vector<2x1024xf32>
    tpu.vector_store %arg2[%c0_4, %c0_5], %9 {strides = array<i32>} : memref<2x1024xf32, #tpu.memory_space<vmem>>, vector<2x1024xf32>,
    return
  }
  func.func @transform_0(%arg0: i32) -> (i32, i32) {
    %c0_i32 = arith.constant 0 : i32
    %c0_i32_0 = arith.constant 0 : i32
    return %arg0, %c0_i32 : i32, i32
  }
  func.func @transform_1(%arg0: i32) -> (i32, i32) {
    %c0_i32 = arith.constant 0 : i32
    %c0_i32_0 = arith.constant 0 : i32
    return %arg0, %c0_i32 : i32, i32
  }
}

</mosaic_0001>

<llo_original>
// kernel: tpu_custom_call.1
$region0: #{tpu_custom_call.1}
  #allocation0 [shape = 'u32[]', space=smem, size = 0x4, offset = 0x4, fixed_abs, tag = 'smem constant byte address 0x4 - core index']
  #allocation1 [shape = 'u32[72,128]{1,0:T(1,128)}', space=vmem, size = 0x9000, scoped, tag = 'internal scratch']
  %s0 = inlined_call_operand.hbm [shape: f32[2,1024], index: 0, kind: input, shape index: {}]
  %s1 = inlined_call_operand.hbm [shape: f32[2,1024], index: 1, kind: output, shape index: {}]
  %s2 = sld [smem:[#allocation0]]
  $region18: #{tpu_custom_call.1} parent=0
    _
  %s4 = ssub.s32 1, %s2
  %s5 = scalar_select 0, %s4, %s2
  $region1: #{tpu_custom_call.1} parent=0
    #allocation2 [shape = 'u8[8192]{0}', space=vmem, size = 0x2000, scoped, tag = 'input window, operand 0, single buffered']
    #allocation3 [shape = 's32[1]{0}', space=sflag, size = 0x4, scoped, tag = 'scoped memory for tpu_custom_call.1']
    #allocation4 [shape = 's32[1]{0}', space=sflag, size = 0x4, scoped, tag = 'scoped memory for tpu_custom_call.1']
    #allocation5 [shape = 'u8[8192]{0}', space=vmem, size = 0x2000, scoped, tag = 'output window, operand 0, single buffered']
    %6 = vsyncpa [#allocation3], 0
    %7 = vsyncpa [#allocation4], 0
    // Predicated region
    $region2: #{tpu_custom_call.1} parent=1 // pred_check
      _
    $region3: #{tpu_custom_call.1} parent=1 // pred_check_branch
      %9 = sbr.rel (0) target = $region5
    $region4: #{tpu_custom_call.1} parent=1 // pred_region
      %11 = vsyncadd [#allocation3], 0
      %s13 = sshll.u32 %s0, 4
      %s14 = int_to_ptr.hbm [resolvable:$true] %s13
      %s15 = sshll.u32 [#allocation2], 4
      %s16 = int_to_ptr.vmem [resolvable:$true] %s15
      %18 = dma.hbm_to_vmem [thread:$0]  %s14, 256, %s16, [#allocation3]
    $region5: #{tpu_custom_call.1} parent=1 // pred_fallthru
      _
    // Predicated region
    $region6: #{tpu_custom_call.1} parent=1 // pred_check
      _
    $region7: #{tpu_custom_call.1} parent=1 // pred_check_branch
      %20 = sbr.rel (0) target = $region9
    $region8: #{tpu_custom_call.1} parent=1 // pred_region
      %22 = dma.done [#allocation3], 256
    $region9: #{tpu_custom_call.1} parent=1 // pred_fallthru
      _
    %v23 = vld [vmem:[#allocation2] sm:$0xff]
    %v24 = vld [vmem:[#allocation2 + $0x8] sm:$0xff]
    %v25 = vadd.f32 %v23, 3.0
    %v26 = vadd.f32 %v24, 3.0
    %v27 = vmax.f32 %v25, 0.0
    %v28 = vmax.f32 %v26, 0.0
    %v29 = vmin.f32 %v27, 6.0
    %v30 = vmin.f32 %v28, 6.0
    %v31 = vmul.f32 %v29, 0.16666667
    %v32 = vmul.f32 %v30, 0.16666667
    %v33 = vmul.f32 %v23, %v31
    %v34 = vmul.f32 %v24, %v32
    %35 = vst [vmem:[#allocation5] sm:$0xff] %v33
    %36 = vst [vmem:[#allocation5 + $0x8] sm:$0xff] %v34
    // Predicated region
    $region10: #{tpu_custom_call.1} parent=1 // pred_check
      _
    $region11: #{tpu_custom_call.1} parent=1 // pred_check_branch
      %38 = sbr.rel (0) target = $region13
    $region12: #{tpu_custom_call.1} parent=1 // pred_region
      %40 = vsyncadd [#allocation4], 0
      %s42 = sshll.u32 [#allocation5], 4
      %s43 = int_to_ptr.vmem [resolvable:$true] %s42
      %s44 = sshll.u32 %s1, 4
      %s45 = int_to_ptr.hbm [resolvable:$true] %s44
      %47 = dma.vmem_to_hbm [thread:$0]  %s43, 256, %s45, [#allocation4]
    $region13: #{tpu_custom_call.1} parent=1 // pred_fallthru
      _
    // Predicated region
    $region14: #{tpu_custom_call.1} parent=1 // pred_check
      _
    $region15: #{tpu_custom_call.1} parent=1 // pred_check_branch
      %49 = sbr.rel (0) target = $region17
    $region16: #{tpu_custom_call.1} parent=1 // pred_region
      %51 = dma.done [#allocation4], 256
    $region17: #{tpu_custom_call.1} parent=1 // pred_fallthru
      _
    %52 = vsyncpa [#allocation3], 1
    %53 = vsyncpa [#allocation4], 1

</llo_original>
